<compile_context>
chip_gen: v5e
topology: v5e:2x2
jax: 0.10.0
libtpu: 0.0.40
codegen_flags: <defaults>
</compile_context>

<pallas_src>
import functools
import math

import jax
import jax.numpy as jnp
from jax.experimental import pallas as pl
from jax.experimental.pallas import tpu as pltpu


# ----------------------------------------------------------------------------
# Config (same schema as the PyTorch module's __init__ argument)
# ----------------------------------------------------------------------------
MLP_CONFIG = [
    {"in": 16, "out": 32, "drop_out": 0.5, "activation": "ReLU"},
    {"in": 32, "out": 64, "drop_out": 0.0, "activation": "Sigmoid"},
    {"in": 64, "out": 8,  "drop_out": 0.0, "activation": "None"},
]

LANE = 128          # vreg lane width
BATCH_ALIGN = 16    # multiple of 8 (f32 sublane) and 16 (bf16 packed sublane)


def _round_up(n, m):
    return ((n + m - 1) // m) * m


def _apply_activation(h, name):
    # h is float32 here; keep transcendentals in f32 (no bf16 EUP on v5e).
    if name == "ReLU":
        return jnp.maximum(h, 0.0)
    if name == "Sigmoid":
        # sigmoid(x) == 0.5*(tanh(x/2)+1): single EUP push instead of exp+divide.
        return 0.5 * (jnp.tanh(0.5 * h) + 1.0)
    if name == "Tanh":
        return jnp.tanh(h)
    if name == "None":
        return h
    raise ValueError(f"unsupported activation: {name}")


# ----------------------------------------------------------------------------
# Fused MLP kernel: refs are (x, w0, b0, w1, b1, ..., out)
#   x   : (TB, in0)             f32   (cast to bf16 in-kernel)
#   w_l : (in_pad_l, out_pad_l) bf16  (zero-padded rows/cols)
#   b_l : (1, out_pad_l)        f32   (zero-padded cols)
#   out : (TB, out_pad_last)    bf16
# ----------------------------------------------------------------------------
def _mlp_kernel(config, *refs):
    x_ref = refs[0]
    out_ref = refs[-1]
    param_refs = refs[1:-1]

    # In-kernel bf16 cast: cheap VPU work hidden under the input DMA.
    h = x_ref[...].astype(jnp.bfloat16)
    n_layers = len(config)
    for layer_id, layer_cfg in enumerate(config):
        w_ref = param_refs[2 * layer_id]
        b_ref = param_refs[2 * layer_id + 1]
        # MXU matmul with bf16 operands, f32 accumulation.
        acc = jnp.dot(h, w_ref[...], preferred_element_type=jnp.float32)
        acc = acc + b_ref[...]
        # Dropout: identity in inference mode.
        acc = _apply_activation(acc, layer_cfg["activation"])
        if layer_id < n_layers - 1:
            h = acc.astype(jnp.bfloat16)
        else:
            # bf16 store halves output HBM writeback; stays a full-width vst.
            out_ref[...] = acc.astype(out_ref.dtype)


# ----------------------------------------------------------------------------
# One-time parameter preparation (hoisted out of the forward path)
# ----------------------------------------------------------------------------
def prepare_params(params, config):
    """Pad + cast raw params into kernel layout.  Call once, reuse forever.

    params: flat list [w0, b0, w1, b1, ...] with w_l (in_l, out_l) f32 and
    b_l (1, out_l) f32.  Padded weight rows/cols and bias cols are exactly
    zero so spurious activations on padded lanes (e.g. sigmoid(0)=0.5)
    contribute nothing to the next matmul.
    """
    padded = []
    for layer_id, cfg in enumerate(config):
        w = params[2 * layer_id]       # (in, out) f32
        b = params[2 * layer_id + 1]   # (1, out)  f32
        # Layer 0 keeps the true input width (x is not feature-padded);
        # later layers pad input rows to the previous layer's padded width.
        in_p = cfg["in"] if layer_id == 0 else _round_up(cfg["in"], LANE)
        out_p = _round_up(cfg["out"], LANE)
        w_pad = jnp.zeros((in_p, out_p), jnp.float32)
        w_pad = w_pad.at[: cfg["in"], : cfg["out"]].set(w)
        b_pad = jnp.zeros((1, out_p), jnp.float32)
        b_pad = b_pad.at[:, : cfg["out"]].set(b)
        padded += [w_pad.astype(jnp.bfloat16), b_pad]
    return [jax.device_put(p) for p in padded]


# ----------------------------------------------------------------------------
# Wrapper: pads batch, tiles batch across the grid.
# ----------------------------------------------------------------------------
def mlp_forward(x, padded_params, config, *, block_batch=4096):
    """x: (B, config[0]['in']) float32; padded_params from prepare_params()."""
    B, in_dim = x.shape
    assert in_dim == config[0]["in"]
    out_dim = config[-1]["out"]
    out_pad_last = _round_up(out_dim, LANE)

    # --- batch tile selection -----------------------------------------------
    # Default 4096-row tile: amortizes per-grid-step overhead while the
    # double-buffered x (f32) + out (bf16) blocks stay ~1.3 MiB — far below
    # scoped VMEM even on v5e's 16 MiB default (no vmem_limit override needed).
    n_rows = _round_up(B, BATCH_ALIGN)
    TB = min(_round_up(block_batch, BATCH_ALIGN), n_rows)
    # v7x has 2 TensorCores; a "parallel" axis only shards a multi-step grid,
    # so split into >= 2 tiles whenever the batch is large enough.
    if TB == n_rows and n_rows >= 2 * BATCH_ALIGN:
        TB = _round_up((n_rows + 1) // 2, BATCH_ALIGN)
    B_pad = _round_up(B, TB)
    grid = (B_pad // TB,)

    # --- pad batch (x stays f32; kernel casts) -------------------------------
    x_p = x if B_pad == B else jnp.pad(x, ((0, B_pad - B), (0, 0)))

    inputs = [x_p] + list(padded_params)

    # --- BlockSpecs -----------------------------------------------------------
    x_spec = pl.BlockSpec((TB, in_dim), lambda i: (i, 0))
    # Weights/biases are tiny and constant across the grid (index_map -> (0,0))
    # so they stay VMEM-resident; only x / out stream with the grid.
    # TODO(synk): pipeline_mode=pl.Buffered(1) would drop their redundant second
    # buffer (~70 KiB); omitted for jax-version portability.
    param_specs = [
        pl.BlockSpec(p.shape, lambda i: (0, 0)) for p in padded_params
    ]
    out_spec = pl.BlockSpec((TB, out_pad_last), lambda i: (i, 0))

    # --- cost estimate (advisory) ---------------------------------------------
    flops = 2 * B_pad * sum(c["in"] * c["out"] for c in config)
    transcendentals = B_pad * sum(
        c["out"] for c in config if c["activation"] in ("Sigmoid", "Tanh")
    )
    param_bytes = sum(int(p.size) * p.dtype.itemsize for p in padded_params)
    bytes_accessed = 4 * B_pad * in_dim + 2 * B_pad * out_pad_last + param_bytes

    kernel = functools.partial(_mlp_kernel, config)

    out_padded = pl.pallas_call(
        kernel,
        out_shape=jax.ShapeDtypeStruct((B_pad, out_pad_last), jnp.bfloat16),
        grid=grid,
        in_specs=[x_spec] + param_specs,
        out_specs=out_spec,
        compiler_params=pltpu.CompilerParams(
            dimension_semantics=("parallel",)
        ),
        cost_estimate=pl.CostEstimate(
            flops=flops,
            transcendentals=transcendentals,
            bytes_accessed=bytes_accessed,
        ),
    )(*inputs)

    # Slice the logical result back out and restore the module's f32 dtype
    # (tiny (B, out_dim) cast — negligible vs. the padded-lane writeback saved).
    return out_padded[:B, :out_dim].astype(jnp.float32)


# ----------------------------------------------------------------------------
# Deterministic parameter init (mirrors nn.Linear default init bounds)
# ----------------------------------------------------------------------------
def init_params(config, key):
    params = []
    for layer_cfg in config:
        fan_in, fan_out = layer_cfg["in"], layer_cfg["out"]
        key, kw, kb = jax.random.split(key, 3)
        bound = 1.0 / math.sqrt(fan_in)
        # Stored as (in, out) -> kernel does x @ W (matches nn.Linear output).
        w = jax.random.uniform(kw, (fan_in, fan_out), jnp.float32, -bound, bound)
        b = jax.random.uniform(kb, (1, fan_out), jnp.float32, -bound, bound)
        params += [w, b]
    return params


# Reference that mirrors the kernel numerics (bf16 operands, f32 accumulate,
# bf16 final store).
def mlp_reference(x, params, config):
    h = x.astype(jnp.bfloat16)
    n_layers = len(config)
    for layer_id, layer_cfg in enumerate(config):
        w = params[2 * layer_id].astype(jnp.bfloat16)
        b = params[2 * layer_id + 1]
        acc = jnp.dot(h, w, preferred_element_type=jnp.float32) + b
        acc = _apply_activation(acc, layer_cfg["activation"])
        if layer_id < n_layers - 1:
            h = acc.astype(jnp.bfloat16)
        else:
            h = acc.astype(jnp.bfloat16).astype(jnp.float32)
    return h


# Pure-f32 reference (semantic check vs. the original PyTorch math).
def mlp_reference_f32(x, params, config):
    h = x
    for layer_id, layer_cfg in enumerate(config):
        w = params[2 * layer_id]
        b = params[2 * layer_id + 1]
        h = h @ w + b
        act = layer_cfg["activation"]
        if act == "ReLU":
            h = jnp.maximum(h, 0.0)
        elif act == "Sigmoid":
            h = jax.nn.sigmoid(h)
        elif act == "Tanh":
            h = jnp.tanh(h)
    return h


if __name__ == "__main__":
    key = jax.random.PRNGKey(0)
    key, kx = jax.random.split(key)

    batch = 8
    x = jax.random.normal(kx, (batch, MLP_CONFIG[0]["in"]), jnp.float32)
    params = init_params(MLP_CONFIG, key)

    padded_params = prepare_params(params, MLP_CONFIG)   # one-time

    out = mlp_forward(x, padded_params, MLP_CONFIG)
    out = jax.block_until_ready(out)

    assert out.shape == (batch, MLP_CONFIG[-1]["out"])

    ref_bf16 = mlp_reference(x, params, MLP_CONFIG)
    assert jnp.allclose(out, ref_bf16, atol=4e-2, rtol=2e-2), \
        "mismatch vs. bf16-matched JAX reference"

    ref_f32 = mlp_reference_f32(x, params, MLP_CONFIG)
    assert jnp.allclose(out, ref_f32, atol=6e-2, rtol=6e-2), \
        "mismatch vs. f32 JAX reference"

    print("KERNEL_OK")
</pallas_src>

<mosaic_0001>
module attributes {stable_mosaic.version = 11 : i64} {
  func.func @_mlp_kernel(%arg0: i32, %arg1: memref<16x16xf32, #tpu.memory_space<vmem>>, %arg2: memref<16x128xbf16, #tpu.memory_space<vmem>>, %arg3: memref<1x128xf32, #tpu.memory_space<vmem>>, %arg4: memref<128x128xbf16, #tpu.memory_space<vmem>>, %arg5: memref<1x128xf32, #tpu.memory_space<vmem>>, %arg6: memref<128x128xbf16, #tpu.memory_space<vmem>>, %arg7: memref<1x128xf32, #tpu.memory_space<vmem>>, %arg8: memref<16x128xbf16, #tpu.memory_space<vmem>>) attributes {dimension_semantics = [#tpu.dimension_semantics<parallel>], iteration_bounds = array<i64: 1>, scalar_prefetch = 0 : i64, scratch_operands = 0 : i64, tpu.core_type = #tpu.core_type<tc>, window_params = [{transform_indices = @transform_0, window_bounds = array<i64: 16, 16>}, {pipeline_mode = #tpu.pipeline_mode<synchronous>, transform_indices = @transform_1, window_bounds = array<i64: 16, 128>}, {pipeline_mode = #tpu.pipeline_mode<synchronous>, transform_indices = @transform_2, window_bounds = array<i64: 1, 128>}, {pipeline_mode = #tpu.pipeline_mode<synchronous>, transform_indices = @transform_3, window_bounds = array<i64: 128, 128>}, {pipeline_mode = #tpu.pipeline_mode<synchronous>, transform_indices = @transform_4, window_bounds = array<i64: 1, 128>}, {pipeline_mode = #tpu.pipeline_mode<synchronous>, transform_indices = @transform_5, window_bounds = array<i64: 128, 128>}, {pipeline_mode = #tpu.pipeline_mode<synchronous>, transform_indices = @transform_6, window_bounds = array<i64: 1, 128>}, {transform_indices = @transform_7, window_bounds = array<i64: 16, 128>}]} {
    %c0 = arith.constant 0 : index
    %c0_0 = arith.constant 0 : index
    %0 = vector.load %arg1[%c0, %c0_0] : memref<16x16xf32, #tpu.memory_space<vmem>>, vector<16x16xf32>
    %1 = arith.truncf %0 : vector<16x16xf32> to vector<16x16xbf16>
    %c0_1 = arith.constant 0 : index
    %c0_2 = arith.constant 0 : index
    %2 = vector.load %arg2[%c0_1, %c0_2] : memref<16x128xbf16, #tpu.memory_space<vmem>>, vector<16x128xbf16>
    %cst = arith.constant dense<0.000000e+00> : vector<16x128xf32>
    %3 = tpu.matmul %1, %2, %cst {dimension_numbers = #tpu.dot_dimension_numbers<[1], [0], [0], [1], [0, 0, 1, 1], [], []>} : vector<16x16xbf16>, vector<16x128xbf16>, vector<16x128xf32> -> vector<16x128xf32>
    %c0_3 = arith.constant 0 : index
    %c0_4 = arith.constant 0 : index
    %4 = vector.load %arg3[%c0_3, %c0_4] : memref<1x128xf32, #tpu.memory_space<vmem>>, vector<1x128xf32>
    %5 = vector.broadcast %4 : vector<1x128xf32> to vector<16x128xf32>
    %6 = arith.addf %3, %5 : vector<16x128xf32>
    %cst_5 = arith.constant 0.000000e+00 : f32
    %7 = vector.broadcast %cst_5 : f32 to vector<16x128xf32>
    %8 = arith.maximumf %6, %7 : vector<16x128xf32>
    %9 = arith.truncf %8 : vector<16x128xf32> to vector<16x128xbf16>
    %c0_6 = arith.constant 0 : index
    %c0_7 = arith.constant 0 : index
    %10 = vector.load %arg4[%c0_6, %c0_7] : memref<128x128xbf16, #tpu.memory_space<vmem>>, vector<128x128xbf16>
    %cst_8 = arith.constant dense<0.000000e+00> : vector<16x128xf32>
    %11 = tpu.matmul %9, %10, %cst_8 {dimension_numbers = #tpu.dot_dimension_numbers<[1], [0], [0], [1], [0, 0, 1, 1], [], []>} : vector<16x128xbf16>, vector<128x128xbf16>, vector<16x128xf32> -> vector<16x128xf32>
    %c0_9 = arith.constant 0 : index
    %c0_10 = arith.constant 0 : index
    %12 = vector.load %arg5[%c0_9, %c0_10] : memref<1x128xf32, #tpu.memory_space<vmem>>, vector<1x128xf32>
    %13 = vector.broadcast %12 : vector<1x128xf32> to vector<16x128xf32>
    %14 = arith.addf %11, %13 : vector<16x128xf32>
    %cst_11 = arith.constant 5.000000e-01 : f32
    %15 = vector.broadcast %cst_11 : f32 to vector<16x128xf32>
    %16 = arith.mulf %15, %14 : vector<16x128xf32>
    %17 = math.tanh %16 : vector<16x128xf32>
    %cst_12 = arith.constant 1.000000e+00 : f32
    %18 = vector.broadcast %cst_12 : f32 to vector<16x128xf32>
    %19 = arith.addf %17, %18 : vector<16x128xf32>
    %cst_13 = arith.constant 5.000000e-01 : f32
    %20 = vector.broadcast %cst_13 : f32 to vector<16x128xf32>
    %21 = arith.mulf %20, %19 : vector<16x128xf32>
    %22 = arith.truncf %21 : vector<16x128xf32> to vector<16x128xbf16>
    %c0_14 = arith.constant 0 : index
    %c0_15 = arith.constant 0 : index
    %23 = vector.load %arg6[%c0_14, %c0_15] : memref<128x128xbf16, #tpu.memory_space<vmem>>, vector<128x128xbf16>
    %cst_16 = arith.constant dense<0.000000e+00> : vector<16x128xf32>
    %24 = tpu.matmul %22, %23, %cst_16 {dimension_numbers = #tpu.dot_dimension_numbers<[1], [0], [0], [1], [0, 0, 1, 1], [], []>} : vector<16x128xbf16>, vector<128x128xbf16>, vector<16x128xf32> -> vector<16x128xf32>
    %c0_17 = arith.constant 0 : index
    %c0_18 = arith.constant 0 : index
    %25 = vector.load %arg7[%c0_17, %c0_18] : memref<1x128xf32, #tpu.memory_space<vmem>>, vector<1x128xf32>
    %26 = vector.broadcast %25 : vector<1x128xf32> to vector<16x128xf32>
    %27 = arith.addf %24, %26 : vector<16x128xf32>
    %28 = arith.truncf %27 : vector<16x128xf32> to vector<16x128xbf16>
    %c0_19 = arith.constant 0 : index
    %c0_20 = arith.constant 0 : index
    %29 = vector.load %arg8[%c0_19, %c0_20] : memref<16x128xbf16, #tpu.memory_space<vmem>>, vector<16x128xbf16>
    tpu.vector_store %arg8[%c0_19, %c0_20], %28 {strides = array<i32>} : memref<16x128xbf16, #tpu.memory_space<vmem>>, vector<16x128xbf16>,
    return
  }
  func.func @transform_0(%arg0: i32) -> (i32, i32) {
    %c0_i32 = arith.constant 0 : i32
    %c0_i32_0 = arith.constant 0 : i32
    return %arg0, %c0_i32 : i32, i32
  }
  func.func @transform_1(%arg0: i32) -> (i32, i32) {
    %c0_i32 = arith.constant 0 : i32
    %c0_i32_0 = arith.constant 0 : i32
    %c0_i32_1 = arith.constant 0 : i32
    return %c0_i32, %c0_i32_0 : i32, i32
  }
  func.func @transform_2(%arg0: i32) -> (i32, i32) {
    %c0_i32 = arith.constant 0 : i32
    %c0_i32_0 = arith.constant 0 : i32
    %c0_i32_1 = arith.constant 0 : i32
    return %c0_i32, %c0_i32_0 : i32, i32
  }
  func.func @transform_3(%arg0: i32) -> (i32, i32) {
    %c0_i32 = arith.constant 0 : i32
    %c0_i32_0 = arith.constant 0 : i32
    %c0_i32_1 = arith.constant 0 : i32
    return %c0_i32, %c0_i32_0 : i32, i32
  }
  func.func @transform_4(%arg0: i32) -> (i32, i32) {
    %c0_i32 = arith.constant 0 : i32
    %c0_i32_0 = arith.constant 0 : i32
    %c0_i32_1 = arith.constant 0 : i32
    return %c0_i32, %c0_i32_0 : i32, i32
  }
  func.func @transform_5(%arg0: i32) -> (i32, i32) {
    %c0_i32 = arith.constant 0 : i32
    %c0_i32_0 = arith.constant 0 : i32
    %c0_i32_1 = arith.constant 0 : i32
    return %c0_i32, %c0_i32_0 : i32, i32
  }
  func.func @transform_6(%arg0: i32) -> (i32, i32) {
    %c0_i32 = arith.constant 0 : i32
    %c0_i32_0 = arith.constant 0 : i32
    %c0_i32_1 = arith.constant 0 : i32
    return %c0_i32, %c0_i32_0 : i32, i32
  }
  func.func @transform_7(%arg0: i32) -> (i32, i32) {
    %c0_i32 = arith.constant 0 : i32
    %c0_i32_0 = arith.constant 0 : i32
    return %arg0, %c0_i32 : i32, i32
  }
}

</mosaic_0001>

<llo_original>
// kernel: tpu_custom_call.1
$region0: #{tpu_custom_call.1}
  #allocation0 [shape = 'u32[]', space=smem, size = 0x4, offset = 0x4, fixed_abs, tag = 'smem constant byte address 0x4 - core index']
  #allocation1 [shape = 'u32[72,128]{1,0:T(1,128)}', space=vmem, size = 0x9000, scoped, tag = 'internal scratch']
  %s0 = inlined_call_operand.hbm [shape: f32[16,16], index: 0, kind: input, shape index: {}]
  %s1 = inlined_call_operand.hbm [shape: bf16[16,128], index: 1, kind: input, shape index: {}]
  %s2 = inlined_call_operand.vmem [shape: f32[1,128], index: 2, kind: input, shape index: {}]
  %s3 = inlined_call_operand.hbm [shape: bf16[128,128], index: 3, kind: input, shape index: {}]
  %s4 = inlined_call_operand.vmem [shape: f32[1,128], index: 4, kind: input, shape index: {}]
  %s5 = inlined_call_operand.hbm [shape: bf16[128,128], index: 5, kind: input, shape index: {}]
  %s6 = inlined_call_operand.vmem [shape: f32[1,128], index: 6, kind: input, shape index: {}]
  %s7 = inlined_call_operand.hbm [shape: bf16[16,128], index: 7, kind: output, shape index: {}]
  %s8 = sld [smem:[#allocation0]]
  $region54: #{tpu_custom_call.1} parent=0
    _
  %s10 = ssub.s32 1, %s8
  %s11 = scalar_select 0, %s10, %s8
  $region1: #{tpu_custom_call.1} parent=0
    #allocation2 [shape = 'u8[8192]{0}', space=vmem, size = 0x2000, scoped, tag = 'input window, operand 0, single buffered']
    #allocation3 [shape = 's32[1]{0}', space=sflag, size = 0x4, scoped, tag = 'scoped memory for tpu_custom_call.1']
    #allocation4 [shape = 's32[1]{0}', space=sflag, size = 0x4, scoped, tag = 'scoped memory for tpu_custom_call.1']
    #allocation5 [shape = 'u8[4096]{0}', space=vmem, size = 0x1000, scoped, tag = 'input window, operand 1, single buffered']
    #allocation6 [shape = 's32[1]{0}', space=sflag, size = 0x4, scoped, tag = 'scoped memory for tpu_custom_call.1']
    #allocation7 [shape = 'u8[32768]{0}', space=vmem, size = 0x8000, scoped, tag = 'input window, operand 3, single buffered']
    #allocation8 [shape = 'u8[32768]{0}', space=vmem, size = 0x8000, scoped, tag = 'input window, operand 5, single buffered']
    #allocation9 [shape = 's32[1]{0}', space=sflag, size = 0x4, scoped, tag = 'scoped memory for tpu_custom_call.1']
    #allocation10 [shape = 'u8[4096]{0}', space=vmem, size = 0x1000, scoped, tag = 'output window, operand 0, single buffered']
    %12 = vsyncpa [#allocation3], 0
    %13 = vsyncpa [#allocation6], 0
    %14 = vsyncpa [#allocation9], 0
    %15 = vsyncpa [#allocation4], 0
    // Predicated region
    $region2: #{tpu_custom_call.1} parent=1 // pred_check
      _
    $region3: #{tpu_custom_call.1} parent=1 // pred_check_branch
      %17 = sbr.rel (0) target = $region5
    $region4: #{tpu_custom_call.1} parent=1 // pred_region
      %19 = vsyncadd [#allocation3], 0
      %s20 = sshll.u32 %s0, 4
      %s21 = int_to_ptr.hbm [resolvable:$true] %s20
      %s22 = sshll.u32 [#allocation2], 4
      %s23 = int_to_ptr.vmem [resolvable:$true] %s22
      %28 = dma.hbm_to_vmem [thread:$0]  %s21, 256, %s23, [#allocation3], 128, 128, 8
    $region5: #{tpu_custom_call.1} parent=1 // pred_fallthru
      _
    // Predicated region
    $region6: #{tpu_custom_call.1} parent=1 // pred_check
      _
    $region7: #{tpu_custom_call.1} parent=1 // pred_check_branch
      %30 = sbr.rel (0) target = $region9
    $region8: #{tpu_custom_call.1} parent=1 // pred_region
      %32 = vsyncadd [#allocation6], 0
      %s33 = sshll.u32 %s1, 4
      %s34 = int_to_ptr.hbm [resolvable:$true] %s33
      %s35 = sshll.u32 [#allocation5], 4
      %s36 = int_to_ptr.vmem [resolvable:$true] %s35
      %41 = dma.hbm_to_vmem [thread:$0]  %s34, 128, %s36, [#allocation6], 64, 64, 4
    $region9: #{tpu_custom_call.1} parent=1 // pred_fallthru
      _
    // Predicated region
    $region10: #{tpu_custom_call.1} parent=1 // pred_check
      _
    $region11: #{tpu_custom_call.1} parent=1 // pred_check_branch
      %43 = sbr.rel (0) target = $region13
    $region12: #{tpu_custom_call.1} parent=1 // pred_region
      _
    $region13: #{tpu_custom_call.1} parent=1 // pred_fallthru
      _
    // Predicated region
    $region14: #{tpu_custom_call.1} parent=1 // pred_check
      _
    $region15: #{tpu_custom_call.1} parent=1 // pred_check_branch
      %45 = sbr.rel (0) target = $region17
    $region16: #{tpu_custom_call.1} parent=1 // pred_region
      %47 = vsyncadd [#allocation6], 0
      %s48 = sshll.u32 %s3, 4
      %s49 = int_to_ptr.hbm [resolvable:$true] %s48
      %s50 = sshll.u32 [#allocation7], 4
      %s51 = int_to_ptr.vmem [resolvable:$true] %s50
      %56 = dma.hbm_to_vmem [thread:$0]  %s49, 1024, %s51, [#allocation6], 64, 64, 4
    $region17: #{tpu_custom_call.1} parent=1 // pred_fallthru
      _
    // Predicated region
    $region18: #{tpu_custom_call.1} parent=1 // pred_check
      _
    $region19: #{tpu_custom_call.1} parent=1 // pred_check_branch
      %58 = sbr.rel (0) target = $region21
    $region20: #{tpu_custom_call.1} parent=1 // pred_region
      _
    $region21: #{tpu_custom_call.1} parent=1 // pred_fallthru
      _
    // Predicated region
    $region22: #{tpu_custom_call.1} parent=1 // pred_check
      _
    $region23: #{tpu_custom_call.1} parent=1 // pred_check_branch
      %60 = sbr.rel (0) target = $region25
    $region24: #{tpu_custom_call.1} parent=1 // pred_region
      %62 = vsyncadd [#allocation9], 0
      %s63 = sshll.u32 %s5, 4
      %s64 = int_to_ptr.hbm [resolvable:$true] %s63
      %s65 = sshll.u32 [#allocation8], 4
      %s66 = int_to_ptr.vmem [resolvable:$true] %s65
      %71 = dma.hbm_to_vmem [thread:$0]  %s64, 1024, %s66, [#allocation9], 64, 64, 4
    $region25: #{tpu_custom_call.1} parent=1 // pred_fallthru
      _
    // Predicated region
    $region26: #{tpu_custom_call.1} parent=1 // pred_check
      _
    $region27: #{tpu_custom_call.1} parent=1 // pred_check_branch
      %73 = sbr.rel (0) target = $region29
    $region28: #{tpu_custom_call.1} parent=1 // pred_region
      _
    $region29: #{tpu_custom_call.1} parent=1 // pred_fallthru
      _
    // Predicated region
    $region30: #{tpu_custom_call.1} parent=1 // pred_check
      _
    $region31: #{tpu_custom_call.1} parent=1 // pred_check_branch
      %75 = sbr.rel (0) target = $region33
    $region32: #{tpu_custom_call.1} parent=1 // pred_region
      %77 = dma.done [#allocation3], 256
    $region33: #{tpu_custom_call.1} parent=1 // pred_fallthru
      _
    // Predicated region
    $region34: #{tpu_custom_call.1} parent=1 // pred_check
      _
    $region35: #{tpu_custom_call.1} parent=1 // pred_check_branch
      %79 = sbr.rel (0) target = $region37
    $region36: #{tpu_custom_call.1} parent=1 // pred_region
      %81 = dma.done [#allocation6], 128
    $region37: #{tpu_custom_call.1} parent=1 // pred_fallthru
      _
    // Predicated region
    $region38: #{tpu_custom_call.1} parent=1 // pred_check
      _
    $region39: #{tpu_custom_call.1} parent=1 // pred_check_branch
      %83 = sbr.rel (0) target = $region41
    $region40: #{tpu_custom_call.1} parent=1 // pred_region
      %85 = dma.done [#allocation6], 1024
    $region41: #{tpu_custom_call.1} parent=1 // pred_fallthru
      _
    // Predicated region
    $region42: #{tpu_custom_call.1} parent=1 // pred_check
      _
    $region43: #{tpu_custom_call.1} parent=1 // pred_check_branch
      %87 = sbr.rel (0) target = $region45
    $region44: #{tpu_custom_call.1} parent=1 // pred_region
      %89 = dma.done [#allocation9], 1024
    $region45: #{tpu_custom_call.1} parent=1 // pred_fallthru
      _
    %v91 = vld [vmem:[#allocation2] sm:$0xff]
    %v92 = vld [vmem:[#allocation2 + $0x8] sm:$0xff]
    %v93 = vpack.c.bf16 %v92, %v91
    %v94 = vld [vmem:[#allocation5] sm:$0xf]
    %v95 = vld [vmem:[#allocation5 + $0x4] sm:$0xf]
    %v96 = vld [vmem:[%s2] sm:$0x1]
    %v98 = vperm.slane %v96, 0
    %v102 = vunpack.c.l.b16 %v94
    %v103 = vunpack.c.l.b16 %v95
    %v104 = vpack.c.b16 %v103, %v102
    %vm106 = vcmask 130048
    %v108 = vsel %vm106, %v93, 0
    %110 = vmatpush.bf16.msra.mxu0 0
    %111 = vmatpush.bf16.msra.mxu0 0
    %112 = vmatpush.bf16.msra.mxu0 0
    %113 = vmatpush.bf16.msra.mxu0 0
    %114 = vmatpush.bf16.msra.mxu0 0
    %115 = vmatpush.bf16.msra.mxu0 0
    %116 = vmatpush.bf16.msra.mxu0 0
    %117 = vmatpush.bf16.msra.mxu0 %v104
    %118 = vmatmul.bf16.gmra.mxu0 %v108
    %v119 = vpop.f32.mrf.mxu0
    %v120 = vadd.f32 %v98, %v119
    %v121 = vpop.f32.mrf.mxu0
    %v122 = vadd.f32 %v98, %v121
    %123 = vdwg.mxu0
    %v124 = vmax.f32 %v120, 0.0
    %v125 = vmax.f32 %v122, 0.0
    %v126 = vpack.c.bf16 %v125, %v124
    %v127 = vld [vmem:[#allocation7] sm:$0xf]
    %v128 = vld [vmem:[#allocation7 + $0x4] sm:$0xf]
    %v129 = vld [vmem:[#allocation7 + $0x8] sm:$0xf]
    %v130 = vld [vmem:[#allocation7 + $0xc] sm:$0xf]
    %v131 = vld [vmem:[#allocation7 + $0x10] sm:$0xf]
    %v132 = vld [vmem:[#allocation7 + $0x14] sm:$0xf]
    %v133 = vld [vmem:[#allocation7 + $0x18] sm:$0xf]
    %v134 = vld [vmem:[#allocation7 + $0x1c] sm:$0xf]
    %v135 = vld [vmem:[#allocation7 + $0x20] sm:$0xf]
    %v136 = vld [vmem:[#allocation7 + $0x24] sm:$0xf]
    %v137 = vld [vmem:[#allocation7 + $0x28] sm:$0xf]
    %v138 = vld [vmem:[#allocation7 + $0x2c] sm:$0xf]
    %v139 = vld [vmem:[#allocation7 + $0x30] sm:$0xf]
    %v140 = vld [vmem:[#allocation7 + $0x34] sm:$0xf]
    %v141 = vld [vmem:[#allocation7 + $0x38] sm:$0xf]
    %v142 = vld [vmem:[#allocation7 + $0x3c] sm:$0xf]
    %v143 = vld [vmem:[%s4] sm:$0x1]
    %v145 = vperm.slane %v143, 0
    %v163 = vunpack.c.l.b16 %v127
    %v164 = vunpack.c.l.b16 %v128
    %v165 = vunpack.c.l.b16 %v129
    %v166 = vunpack.c.l.b16 %v130
    %v167 = vunpack.c.l.b16 %v131
    %v168 = vunpack.c.l.b16 %v132
    %v169 = vunpack.c.l.b16 %v133
    %v170 = vunpack.c.l.b16 %v134
    %v171 = vunpack.c.l.b16 %v135
    %v172 = vunpack.c.l.b16 %v136
    %v173 = vunpack.c.l.b16 %v137
    %v174 = vunpack.c.l.b16 %v138
    %v175 = vunpack.c.l.b16 %v139
    %v176 = vunpack.c.l.b16 %v140
    %v177 = vunpack.c.l.b16 %v141
    %v178 = vunpack.c.l.b16 %v142
    %v179 = vpack.c.b16 %v164, %v163
    %v180 = vpack.c.b16 %v166, %v165
    %v181 = vpack.c.b16 %v168, %v167
    %v182 = vpack.c.b16 %v170, %v169
    %v183 = vpack.c.b16 %v172, %v171
    %v184 = vpack.c.b16 %v174, %v173
    %v185 = vpack.c.b16 %v176, %v175
    %v186 = vpack.c.b16 %v178, %v177
    %195 = vmatpush.bf16.msra.mxu0 %v186
    %196 = vmatpush.bf16.msra.mxu0 %v185
    %197 = vmatpush.bf16.msra.mxu0 %v184
    %198 = vmatpush.bf16.msra.mxu0 %v183
    %199 = vmatpush.bf16.msra.mxu0 %v182
    %200 = vmatpush.bf16.msra.mxu0 %v181
    %201 = vmatpush.bf16.msra.mxu0 %v180
    %202 = vmatpush.bf16.msra.mxu0 %v179
    %203 = vmatmul.bf16.gmra.mxu0 %v126
    %v204 = vpop.f32.mrf.mxu0
    %v205 = vadd.f32 %v145, %v204
    %v206 = vpop.f32.mrf.mxu0
    %v207 = vadd.f32 %v145, %v206
    %208 = vdwg.mxu0
    %v209 = vmul.f32 %v205, 0.5
    %v210 = vmul.f32 %v207, 0.5
    %v211 = vtanh.pop %v209
    %v212 = vtanh.pop %v210
    %v213 = vadd.f32 %v211, 1.0
    %v214 = vadd.f32 %v212, 1.0
    %v215 = vmul.f32 %v213, 0.5
    %v216 = vmul.f32 %v214, 0.5
    %v217 = vpack.c.bf16 %v216, %v215
    %v218 = vld [vmem:[#allocation8] sm:$0xf]
    %v219 = vld [vmem:[#allocation8 + $0x4] sm:$0xf]
    %v220 = vld [vmem:[#allocation8 + $0x8] sm:$0xf]
    %v221 = vld [vmem:[#allocation8 + $0xc] sm:$0xf]
    %v222 = vld [vmem:[#allocation8 + $0x10] sm:$0xf]
    %v223 = vld [vmem:[#allocation8 + $0x14] sm:$0xf]
    %v224 = vld [vmem:[#allocation8 + $0x18] sm:$0xf]
    %v225 = vld [vmem:[#allocation8 + $0x1c] sm:$0xf]
    %v226 = vld [vmem:[#allocation8 + $0x20] sm:$0xf]
    %v227 = vld [vmem:[#allocation8 + $0x24] sm:$0xf]
    %v228 = vld [vmem:[#allocation8 + $0x28] sm:$0xf]
    %v229 = vld [vmem:[#allocation8 + $0x2c] sm:$0xf]
    %v230 = vld [vmem:[#allocation8 + $0x30] sm:$0xf]
    %v231 = vld [vmem:[#allocation8 + $0x34] sm:$0xf]
    %v232 = vld [vmem:[#allocation8 + $0x38] sm:$0xf]
    %v233 = vld [vmem:[#allocation8 + $0x3c] sm:$0xf]
    %v234 = vld [vmem:[%s6] sm:$0x1]
    %v236 = vperm.slane %v234, 0
    %v254 = vunpack.c.l.b16 %v218
    %v255 = vunpack.c.l.b16 %v219
    %v256 = vunpack.c.l.b16 %v220
    %v257 = vunpack.c.l.b16 %v221
    %v258 = vunpack.c.l.b16 %v222
    %v259 = vunpack.c.l.b16 %v223
    %v260 = vunpack.c.l.b16 %v224
    %v261 = vunpack.c.l.b16 %v225
    %v262 = vunpack.c.l.b16 %v226
    %v263 = vunpack.c.l.b16 %v227
    %v264 = vunpack.c.l.b16 %v228
    %v265 = vunpack.c.l.b16 %v229
    %v266 = vunpack.c.l.b16 %v230
    %v267 = vunpack.c.l.b16 %v231
    %v268 = vunpack.c.l.b16 %v232
    %v269 = vunpack.c.l.b16 %v233
    %v270 = vpack.c.b16 %v255, %v254
    %v271 = vpack.c.b16 %v257, %v256
    %v272 = vpack.c.b16 %v259, %v258
    %v273 = vpack.c.b16 %v261, %v260
    %v274 = vpack.c.b16 %v263, %v262
    %v275 = vpack.c.b16 %v265, %v264
    %v276 = vpack.c.b16 %v267, %v266
    %v277 = vpack.c.b16 %v269, %v268
    %286 = vmatpush.bf16.msra.mxu0 %v277
    %287 = vmatpush.bf16.msra.mxu0 %v276
    %288 = vmatpush.bf16.msra.mxu0 %v275
    %289 = vmatpush.bf16.msra.mxu0 %v274
    %290 = vmatpush.bf16.msra.mxu0 %v273
    %291 = vmatpush.bf16.msra.mxu0 %v272
    %292 = vmatpush.bf16.msra.mxu0 %v271
    %293 = vmatpush.bf16.msra.mxu0 %v270
    %294 = vmatmul.bf16.gmra.mxu0 %v217
    %v295 = vpop.f32.mrf.mxu0
    %v296 = vadd.f32 %v236, %v295
    %v297 = vpop.f32.mrf.mxu0
    %v298 = vadd.f32 %v236, %v297
    %299 = vdwg.mxu0
    %v300 = vpack.c.bf16 %v296, %v296
    %v301 = vpack.c.bf16 %v298, %v298
    %302 = vst [vmem:[#allocation10] sm:$0xf] %v300
    %303 = vst [vmem:[#allocation10 + $0x4] sm:$0xf] %v301
    // Predicated region
    $region46: #{tpu_custom_call.1} parent=1 // pred_check
      _
    $region47: #{tpu_custom_call.1} parent=1 // pred_check_branch
      %305 = sbr.rel (0) target = $region49
    $region48: #{tpu_custom_call.1} parent=1 // pred_region
      %307 = vsyncadd [#allocation4], 0
      %s308 = sshll.u32 [#allocation10], 4
      %s309 = int_to_ptr.vmem [resolvable:$true] %s308
      %s310 = sshll.u32 %s7, 4
      %s311 = int_to_ptr.hbm [resolvable:$true] %s310
      %316 = dma.vmem_to_hbm [thread:$0]  %s309, 128, %s311, [#allocation4], 64, 64, 4
    $region49: #{tpu_custom_call.1} parent=1 // pred_fallthru
      _
    // Predicated region
    $region50: #{tpu_custom_call.1} parent=1 // pred_check
      _
    $region51: #{tpu_custom_call.1} parent=1 // pred_check_branch
      %318 = sbr.rel (0) target = $region53
    $region52: #{tpu_custom_call.1} parent=1 // pred_region
      %320 = dma.done [#allocation4], 128
    $region53: #{tpu_custom_call.1} parent=1 // pred_fallthru
      _
    %321 = vsyncpa [#allocation3], 1
    %322 = vsyncpa [#allocation6], 1
    %323 = vsyncpa [#allocation9], 1
    %324 = vsyncpa [#allocation4], 1

</llo_original>
